<compile_context>
chip_gen: v6e
topology: v6e:2x2x1
jax: 0.10.0
libtpu: 0.0.40
codegen_flags: <defaults>
</compile_context>

<pallas_src>
import numpy as np
import jax
import jax.numpy as jnp
from jax.experimental import pallas as pl
from jax.experimental.pallas import tpu as pltpu


_LANE = 128            # vreg lane width
_SUB = 8               # vreg sublane count
_MAX_TILE_ROWS = 512   # 512 x 128 x 4B = 256 KiB per f32 block


def _copy_kernel(x_ref, o_ref):
    # Identity: one dense, unmasked block copy per grid step.
    o_ref[...] = x_ref[...]


def _noop_2d(flat2d, tile_rows):
    rows, lane = flat2d.shape
    grid = (rows // tile_rows,)
    return pl.pallas_call(
        _copy_kernel,
        out_shape=jax.ShapeDtypeStruct((rows, lane), flat2d.dtype),
        grid=grid,
        in_specs=[pl.BlockSpec((tile_rows, lane), lambda i: (i, 0))],
        out_specs=pl.BlockSpec((tile_rows, lane), lambda i: (i, 0)),
        compiler_params=pltpu.CompilerParams(
            dimension_semantics=("parallel",)),
    )(flat2d)


def noop_forward(x):
    """NoOp.forward(x) == x, routed through a Pallas TPU copy kernel."""
    shape = x.shape
    total = int(np.prod(shape)) if len(shape) else 1

    # Lane-dense 2D layout: (rows, 128) with rows a multiple of the row tile.
    rows_needed = -(-total // _LANE)                  # ceil(total / 128)
    rows_needed = -(-rows_needed // _SUB) * _SUB      # round up to multiple of 8
    tile_rows = min(rows_needed, _MAX_TILE_ROWS)
    rows = -(-rows_needed // tile_rows) * tile_rows   # pad rows to tile multiple
    padded_total = rows * _LANE

    flat = x.reshape(-1)
    if padded_total != total:
        flat = jnp.pad(flat, (0, padded_total - total))
    out2d = _noop_2d(flat.reshape(rows, _LANE), tile_rows)

    out = out2d.reshape(-1)
    if padded_total != total:
        out = out[:total]
    return out.reshape(shape)


noop_forward_jit = jax.jit(noop_forward)


if __name__ == "__main__":
    key = jax.random.PRNGKey(0)
    key, k1, k2 = jax.random.split(key, 3)

    # Primary input implied by the harness: (batch=2, channels=4, 16, 16).
    x = jax.random.normal(k1, (2, 4, 16, 16), jnp.float32)
    y = jax.block_until_ready(noop_forward_jit(x))
    assert y.shape == x.shape and y.dtype == x.dtype, (y.shape, y.dtype)
    np.testing.assert_array_equal(np.asarray(y), np.asarray(x))

    # Odd-sized input exercising the pad-and-crop (non-multiple-of-1024) path.
    x2 = jax.random.normal(k2, (3, 5, 7), jnp.float32)
    y2 = jax.block_until_ready(noop_forward_jit(x2))
    assert y2.shape == x2.shape and y2.dtype == x2.dtype, (y2.shape, y2.dtype)
    np.testing.assert_array_equal(np.asarray(y2), np.asarray(x2))

    print("KERNEL_OK")
</pallas_src>

<mosaic_0001>
module attributes {stable_mosaic.version = 11 : i64} {
  func.func @_copy_kernel(%arg0: i32, %arg1: memref<16x128xf32, #tpu.memory_space<vmem>>, %arg2: memref<16x128xf32, #tpu.memory_space<vmem>>) attributes {dimension_semantics = [#tpu.dimension_semantics<parallel>], iteration_bounds = array<i64: 1>, scalar_prefetch = 0 : i64, scratch_operands = 0 : i64, tpu.core_type = #tpu.core_type<tc>, window_params = [{transform_indices = @transform_0, window_bounds = array<i64: 16, 128>}, {transform_indices = @transform_1, window_bounds = array<i64: 16, 128>}]} {
    %c0 = arith.constant 0 : index
    %c0_0 = arith.constant 0 : index
    %0 = vector.load %arg1[%c0, %c0_0] : memref<16x128xf32, #tpu.memory_space<vmem>>, vector<16x128xf32>
    %c0_1 = arith.constant 0 : index
    %c0_2 = arith.constant 0 : index
    %1 = vector.load %arg2[%c0_1, %c0_2] : memref<16x128xf32, #tpu.memory_space<vmem>>, vector<16x128xf32>
    tpu.vector_store %arg2[%c0_1, %c0_2], %0 {strides = array<i32>} : memref<16x128xf32, #tpu.memory_space<vmem>>, vector<16x128xf32>,
    return
  }
  func.func @transform_0(%arg0: i32) -> (i32, i32) {
    %c0_i32 = arith.constant 0 : i32
    %c0_i32_0 = arith.constant 0 : i32
    return %arg0, %c0_i32 : i32, i32
  }
  func.func @transform_1(%arg0: i32) -> (i32, i32) {
    %c0_i32 = arith.constant 0 : i32
    %c0_i32_0 = arith.constant 0 : i32
    return %arg0, %c0_i32 : i32, i32
  }
}

</mosaic_0001>

<llo_original>
// kernel: noop_forward.1
$region0: #{noop_forward.1}
  #allocation0 [shape = 'u32[]', space=smem, size = 0x4, offset = 0x4, fixed_abs, tag = 'smem constant byte address 0x4 - core index']
  #allocation1 [shape = 'u32[144,128]{1,0:T(1,128)}', space=vmem, size = 0x12000, scoped, tag = 'internal scratch']
  %s0 = inlined_call_operand.vmem [shape: f32[16,128], index: 0, kind: input, shape index: {}]
  %s1 = inlined_call_operand.vmem [shape: f32[16,128], index: 1, kind: output, shape index: {}]
  %s2 = sld [smem:[#allocation0]]
  $region14: #{noop_forward.1} parent=0
    _
  %s4 = ssub.s32 1, %s2
  %s5 = scalar_select 0, %s4, %s2
  // Predicated region
  $region2: #{noop_forward.1} parent=0 // pred_check
    _
  $region3: #{noop_forward.1} parent=0 // pred_check_branch
    %7 = sbr.rel (0) target = $region5
  $region4: #{noop_forward.1} parent=0 // pred_region
    _
  $region5: #{noop_forward.1} parent=0 // pred_fallthru
    _
  %v8 = vld [vmem:[%s0] sm:$0xff]
  %v9 = vld [vmem:[%s0 + $0x8] sm:$0xff]
  %10 = vst [vmem:[%s1] sm:$0xff] %v8
  %11 = vst [vmem:[%s1 + $0x8] sm:$0xff] %v9
  // Predicated region
  $region6: #{noop_forward.1} parent=0 // pred_check
    _
  $region7: #{noop_forward.1} parent=0 // pred_check_branch
    %13 = sbr.rel (0) target = $region9
  $region8: #{noop_forward.1} parent=0 // pred_region
    _
  $region9: #{noop_forward.1} parent=0 // pred_fallthru
    _
  // Predicated region
  $region10: #{noop_forward.1} parent=0 // pred_check
    _
  $region11: #{noop_forward.1} parent=0 // pred_check_branch
    %15 = sbr.rel (0) target = $region13
  $region12: #{noop_forward.1} parent=0 // pred_region
    _
  $region13: #{noop_forward.1} parent=0 // pred_fallthru
    _

</llo_original>
